<compile_context>
chip_gen: v6e
topology: v6e:2x2x1
jax: 0.10.0
libtpu: 0.0.40
codegen_flags: <defaults>
</compile_context>

<pallas_src>
import math
import numpy as np
import jax
import jax.numpy as jnp
from jax.experimental import pallas as pl
from jax.experimental.pallas import tpu as pltpu


def _make_kernel(orig, pad_factor, omega, mean_data, std_model, mean_model, true_B):
    omega2 = float(omega) ** 2
    inv_pde = 1.0 / float(true_B * orig * orig)
    inv_bnd = 0.25 / float(true_B * orig)
    use_interior = pad_factor > 0

    def kernel(A_ref, a_ref, u_ref, bnd_ref, w_ref, mint_ref, loss_ref, acc_ref):
        g = pl.program_id(0)

        @pl.when(g == 0)
        def _init():
            acc_ref[0] = jnp.float32(0.0)
            acc_ref[1] = jnp.float32(0.0)

        # ---- fused Unnormalize (helmholtz branch), lane-dense (S^2, BB) -----
        a_un = a_ref[...].astype(jnp.float32) + mean_data                 # coefficient
        u_un = u_ref[...].astype(jnp.float32) * std_model + mean_model    # prediction
        bnd_un = bnd_ref[...].astype(jnp.float32) + mean_data             # (1, BB)

        # ---- 2-D spectral Laplacian of every batch item: one MXU matmul -----
        lap = jnp.dot(A_ref[...], u_un, preferred_element_type=jnp.float32)

        # ---- PDE residual  | Laplace(u) - (-omega^2 a^2 u) |,  L1 sum -------
        res = jnp.abs(lap + omega2 * (a_un * a_un) * u_un)
        if use_interior:
            res = res * mint_ref[...]          # restrict to [:orig, :orig]
        pde_sum = jnp.sum(res)

        # ---- boundary L1 residual on the 4 domain edges ----------------------
        bnd_sum = jnp.sum(jnp.abs(u_un - bnd_un) * w_ref[...])

        acc_ref[0] = acc_ref[0] + pde_sum
        acc_ref[1] = acc_ref[1] + bnd_sum

        # Output block index is constant -> the last step's values persist.
        loss_ref[0, 0] = acc_ref[0] * inv_pde
        loss_ref[0, 1] = acc_ref[1] * inv_bnd

    return kernel


class LossPDEHelmholtz:
    """JAX/Pallas equivalent of Loss_PDE(which_example='helmholtz', p=1)."""

    def __init__(self, normalization_values, p=1, pad_factor=0, in_size=16,
                 omega=5.0 * math.pi / 2.0, block_b=512):
        assert p == 1, "only the p=1 (L1Loss) path is implemented"
        assert in_size % 2 == 0
        assert block_b % 128 == 0
        self.mean_data = float(normalization_values['mean_data'])
        self.std_model = float(normalization_values['std_model'])
        self.mean_model = float(normalization_values['mean_model'])
        self.pad_factor = int(pad_factor)
        self.S = int(in_size)
        self.S2 = self.S * self.S
        self.orig = self.S - self.pad_factor
        self.D = 1.0 + self.pad_factor / (self.S - self.pad_factor) * 1.0
        self.omega = float(omega)
        self.block_b = int(block_b)

        # Real symmetric circulant realizing ifft(-4(pi/D)^2 k^2 fft(.)) per axis.
        l2 = self._build_l2_np(self.S, self.D)
        assert np.allclose(l2, l2.T, atol=1e-6)
        # Dense 2-D Laplacian on the flattened (row-major p = i*S + j) grid.
        eye = np.eye(self.S, dtype=np.float64)
        A = np.kron(l2, eye) + np.kron(eye, l2)
        self.A = jnp.asarray(A, dtype=jnp.float32)                 # (S^2, S^2)

        w_bnd, m_int = self._build_masks(self.S, self.orig, self.pad_factor)
        self.w_bnd = jnp.asarray(w_bnd)                            # (S^2, 1)
        self.m_int = jnp.asarray(m_int)                            # (S^2, 1)

        self._call_cache = {}

    # ---------------------------------------------------------------- helpers
    @staticmethod
    def _build_l2_np(s, D):
        k_max = s // 2
        k = np.concatenate([np.arange(0, k_max + 1),
                            np.arange(-k_max + 1, 0)]).astype(np.float64)
        m = -4.0 * (np.pi / D) ** 2 * k ** 2
        n = np.arange(s)
        F = np.exp(-2j * np.pi * np.outer(n, n) / s)               # DFT matrix
        return np.real((np.conj(F) / s) @ (m[:, None] * F))        # ifft diag(m) fft

    @staticmethod
    def _build_masks(S, orig, pad_factor):
        row_idx = S - 1 - pad_factor                   # torch: [..., -1 - pad, :]
        p = np.arange(S * S)
        i, j = p // S, p % S
        row_sel = ((i == 0) | (i == row_idx)) & (j < orig)
        col_sel = ((j == 0) | (j == row_idx)) & (i < orig)
        w_bnd = (row_sel.astype(np.float32)
                 + col_sel.astype(np.float32)).reshape(S * S, 1)   # corners x2
        m_int = ((i < orig) & (j < orig)).astype(np.float32).reshape(S * S, 1)
        return w_bnd, m_int

    def _plan(self, B):
        if B <= self.block_b:
            return B, B, 1                              # Bp, BB, n_blocks
        BB = self.block_b
        n_blocks = -(-B // BB)
        return n_blocks * BB, BB, n_blocks

    def _build_call(self, B, Bp, BB, n_blocks, dt_a, dt_u):
        key = (B, Bp, BB, n_blocks, dt_a, dt_u)
        fn = self._call_cache.get(key)
        if fn is not None:
            return fn
        S2 = self.S2
        kernel = _make_kernel(self.orig, self.pad_factor, self.omega,
                              self.mean_data, self.std_model, self.mean_model, B)
        fn = pl.pallas_call(
            kernel,
            out_shape=jax.ShapeDtypeStruct((1, 2), jnp.float32),
            grid=(n_blocks,),
            in_specs=[
                pl.BlockSpec((S2, S2), lambda g: (0, 0)),   # A        (resident)
                pl.BlockSpec((S2, BB), lambda g: (0, g)),   # a field  (per block)
                pl.BlockSpec((S2, BB), lambda g: (0, g)),   # u field  (per block)
                pl.BlockSpec((1, BB), lambda g: (0, g)),    # boundary row
                pl.BlockSpec((S2, 1), lambda g: (0, 0)),    # boundary weights
                pl.BlockSpec((S2, 1), lambda g: (0, 0)),    # interior mask
            ],
            out_specs=pl.BlockSpec((1, 2), lambda g: (0, 0),
                                   memory_space=pltpu.MemorySpace.SMEM),
            scratch_shapes=[pltpu.SMEM((2,), jnp.float32)],
            compiler_params=pltpu.CompilerParams(
                dimension_semantics=("arbitrary",)),
        )
        self._call_cache[key] = fn
        return fn

    # ------------------------------------------------------------------ call
    def __call__(self, inp, out):
        B = inp.shape[0]
        S, S2 = self.S, self.S2
        assert inp.shape[1] >= 2 and inp.shape[-2:] == (S, S)
        assert out.shape[-2:] == (S, S)

        # Lane-dense packing (layout plumbing only): spatial on sublanes,
        # batch on lanes.  Only channel 0 + the boundary scalar are shipped.
        a_pack = jnp.transpose(inp[:, 0].reshape(B, S2))            # (S^2, B)
        u_pack = jnp.transpose(out.reshape(B, S2))                  # (S^2, B)
        bnd_row = inp[:, 1, 0, 0].reshape(1, B)                     # (1, B)

        Bp, BB, n_blocks = self._plan(B)
        if Bp != B:
            # Pad with values whose UN-normalized image is exactly zero so the
            # padded lanes contribute nothing to either loss sum.
            npad = Bp - B
            a_pack = jnp.pad(a_pack, ((0, 0), (0, npad)),
                             constant_values=-self.mean_data)
            u_pack = jnp.pad(u_pack, ((0, 0), (0, npad)),
                             constant_values=-(self.mean_model / self.std_model))
            bnd_row = jnp.pad(bnd_row, ((0, 0), (0, npad)),
                              constant_values=-self.mean_data)

        fn = self._build_call(B, Bp, BB, n_blocks,
                              str(a_pack.dtype), str(u_pack.dtype))
        losses = fn(self.A, a_pack, u_pack, bnd_row, self.w_bnd, self.m_int)
        return losses[0, 0], losses[0, 1]


def reference_loss(inp, out, norm, pad_factor, in_size, omega):
    """Pure-JAX reference mirroring the PyTorch module (uses jnp.fft)."""
    s = in_size
    orig = in_size - pad_factor
    D = 1.0 + pad_factor / (in_size - pad_factor) * 1.0
    inp_u = inp + norm['mean_data']
    out_u = out * norm['std_model'] + norm['mean_model']
    a = inp_u[:, 0]
    u = out_u[:, 0]
    bnd = inp_u[:, 1, 0, 0][:, None]

    k_max = s // 2
    k = jnp.concatenate([jnp.arange(0, k_max + 1),
                         jnp.arange(-k_max + 1, 0)]).astype(jnp.float32)
    kx = jnp.broadcast_to(k[:, None], (s, s))[None]
    ky = jnp.broadcast_to(k[None, :], (s, s))[None]
    u_hat = jnp.fft.fft2(u, axes=(-2, -1))
    lap_hat = -4.0 * (jnp.pi / D) ** 2 * (kx ** 2 + ky ** 2) * u_hat
    lap = jnp.fft.irfft2(lap_hat[..., :k_max + 1], axes=(-2, -1))

    tgt = -(omega ** 2) * a[..., :orig, :orig] ** 2 * u[..., :orig, :orig]
    pde = jnp.mean(jnp.abs(lap[..., :orig, :orig] - tgt))
    ridx = s - 1 - pad_factor
    bl = 0.25 * (jnp.mean(jnp.abs(u[:, 0, :orig] - bnd)) +
                 jnp.mean(jnp.abs(u[:, :orig, 0] - bnd)) +
                 jnp.mean(jnp.abs(u[:, ridx, :orig] - bnd)) +
                 jnp.mean(jnp.abs(u[:, :orig, ridx] - bnd)))
    return pde, bl


if __name__ == "__main__":
    S = 16
    omega = 5.0 * math.pi / 2.0
    norm_values = {'mean_data': 0.25, 'std_model': 1.5, 'mean_model': 0.1}

    key = jax.random.PRNGKey(0)
    k1, k2, k3, k4 = jax.random.split(key, 4)

    # ---- small single-block case (B=2) ------------------------------------
    B = 2
    inp = jax.random.normal(k1, (B, 2, S, S), dtype=jnp.float32)
    out = jax.random.normal(k2, (B, 1, S, S), dtype=jnp.float32)
    loss_mod = LossPDEHelmholtz(norm_values, p=1, pad_factor=0, in_size=S)
    lp, lb = loss_mod(inp, out)
    jax.block_until_ready((lp, lb))
    rp, rb = reference_loss(inp, out, norm_values, 0, S, omega)
    np.testing.assert_allclose(np.asarray(lp), np.asarray(rp), rtol=3e-3, atol=1e-3)
    np.testing.assert_allclose(np.asarray(lb), np.asarray(rb), rtol=3e-3, atol=1e-3)

    # ---- multi-block grid + batch-padding path (B=200 -> 2 blocks of 128) --
    B2 = 200
    inp2 = jax.random.normal(k3, (B2, 2, S, S), dtype=jnp.float32)
    out2 = jax.random.normal(k4, (B2, 1, S, S), dtype=jnp.float32)
    loss_mod2 = LossPDEHelmholtz(norm_values, p=1, pad_factor=0, in_size=S,
                                 block_b=128)
    lp2, lb2 = loss_mod2(inp2, out2)
    jax.block_until_ready((lp2, lb2))
    rp2, rb2 = reference_loss(inp2, out2, norm_values, 0, S, omega)
    np.testing.assert_allclose(np.asarray(lp2), np.asarray(rp2), rtol=3e-3, atol=1e-3)
    np.testing.assert_allclose(np.asarray(lb2), np.asarray(rb2), rtol=3e-3, atol=1e-3)

    print("KERNEL_OK")
</pallas_src>

<mosaic_0001>
module attributes {stable_mosaic.version = 11 : i64} {
  func.func @kernel(%arg0: i32, %arg1: memref<256x256xf32, #tpu.memory_space<vmem>>, %arg2: memref<256x2xf32, #tpu.memory_space<vmem>>, %arg3: memref<256x2xf32, #tpu.memory_space<vmem>>, %arg4: memref<1x2xf32, #tpu.memory_space<vmem>>, %arg5: memref<256x1xf32, #tpu.memory_space<vmem>>, %arg6: memref<256x1xf32, #tpu.memory_space<vmem>>, %arg7: memref<1x2xf32, #tpu.memory_space<smem>>, %arg8: memref<2xf32, #tpu.memory_space<smem>>) attributes {dimension_semantics = [#tpu.dimension_semantics<arbitrary>], iteration_bounds = array<i64: 1>, scalar_prefetch = 0 : i64, scratch_operands = 1 : i64, tpu.core_type = #tpu.core_type<tc>, window_params = [{pipeline_mode = #tpu.pipeline_mode<synchronous>, transform_indices = @transform_0, window_bounds = array<i64: 256, 256>}, {transform_indices = @transform_1, window_bounds = array<i64: 256, 2>}, {transform_indices = @transform_2, window_bounds = array<i64: 256, 2>}, {transform_indices = @transform_3, window_bounds = array<i64: 1, 2>}, {pipeline_mode = #tpu.pipeline_mode<synchronous>, transform_indices = @transform_4, window_bounds = array<i64: 256, 1>}, {pipeline_mode = #tpu.pipeline_mode<synchronous>, transform_indices = @transform_5, window_bounds = array<i64: 256, 1>}, {transform_indices = @transform_6, window_bounds = array<i64: 1, 2>}]} {
    %c0_i32 = arith.constant 0 : i32
    %0 = arith.cmpi eq, %arg0, %c0_i32 : i32
    %1 = arith.extui %0 : i1 to i32
    %c0_i32_0 = arith.constant 0 : i32
    %2 = arith.cmpi ne, %1, %c0_i32_0 : i32
    scf.if %2 {
      %cst_28 = arith.constant 0.000000e+00 : f32
      %c0_29 = arith.constant 0 : index
      %48 = memref.load %arg8[%c0_29] : memref<2xf32, #tpu.memory_space<smem>>
      memref.store %cst_28, %arg8[%c0_29] : memref<2xf32, #tpu.memory_space<smem>>
      %cst_30 = arith.constant 0.000000e+00 : f32
      %c1_31 = arith.constant 1 : index
      %49 = memref.load %arg8[%c1_31] : memref<2xf32, #tpu.memory_space<smem>>
      memref.store %cst_30, %arg8[%c1_31] : memref<2xf32, #tpu.memory_space<smem>>
    } else {
    }
    %c0 = arith.constant 0 : index
    %c0_1 = arith.constant 0 : index
    %3 = vector.load %arg2[%c0, %c0_1] : memref<256x2xf32, #tpu.memory_space<vmem>>, vector<256x2xf32>
    %cst = arith.constant 2.500000e-01 : f32
    %4 = vector.broadcast %cst : f32 to vector<256x2xf32>
    %5 = arith.addf %3, %4 : vector<256x2xf32>
    %c0_2 = arith.constant 0 : index
    %c0_3 = arith.constant 0 : index
    %6 = vector.load %arg3[%c0_2, %c0_3] : memref<256x2xf32, #tpu.memory_space<vmem>>, vector<256x2xf32>
    %cst_4 = arith.constant 1.500000e+00 : f32
    %7 = vector.broadcast %cst_4 : f32 to vector<256x2xf32>
    %8 = arith.mulf %6, %7 : vector<256x2xf32>
    %cst_5 = arith.constant 1.000000e-01 : f32
    %9 = vector.broadcast %cst_5 : f32 to vector<256x2xf32>
    %10 = arith.addf %8, %9 : vector<256x2xf32>
    %c0_6 = arith.constant 0 : index
    %c0_7 = arith.constant 0 : index
    %11 = vector.load %arg4[%c0_6, %c0_7] : memref<1x2xf32, #tpu.memory_space<vmem>>, vector<1x2xf32>
    %cst_8 = arith.constant 2.500000e-01 : f32
    %12 = vector.broadcast %cst_8 : f32 to vector<1x2xf32>
    %13 = arith.addf %11, %12 : vector<1x2xf32>
    %c0_9 = arith.constant 0 : index
    %c0_10 = arith.constant 0 : index
    %14 = vector.load %arg1[%c0_9, %c0_10] : memref<256x256xf32, #tpu.memory_space<vmem>>, vector<256x256xf32>
    %cst_11 = arith.constant dense<0.000000e+00> : vector<256x2xf32>
    %15 = tpu.matmul %14, %10, %cst_11 {dimension_numbers = #tpu.dot_dimension_numbers<[1], [0], [0], [1], [0, 0, 1, 1], [], []>} : vector<256x256xf32>, vector<256x2xf32>, vector<256x2xf32> -> vector<256x2xf32>
    %16 = arith.mulf %5, %5 : vector<256x2xf32>
    %cst_12 = arith.constant 61.6850281 : f32
    %17 = vector.broadcast %cst_12 : f32 to vector<256x2xf32>
    %18 = arith.mulf %17, %16 : vector<256x2xf32>
    %19 = arith.mulf %18, %10 : vector<256x2xf32>
    %20 = arith.addf %15, %19 : vector<256x2xf32>
    %21 = math.absf %20 : vector<256x2xf32>
    %22 = vector.shape_cast %21 : vector<256x2xf32> to vector<1x256x2xf32>
    %cst_13 = arith.constant dense<0.000000e+00> : vector<1xf32>
    %23 = vector.multi_reduction <add>, %22, %cst_13 [1, 2] : vector<1x256x2xf32> to vector<1xf32>
    %24 = vector.shape_cast %23 : vector<1xf32> to vector<1x1x1xf32>
    %25 = vector.extract %24[0, 0, 0] : f32 from vector<1x1x1xf32>
    %26 = vector.broadcast %13 : vector<1x2xf32> to vector<256x2xf32>
    %27 = arith.subf %10, %26 : vector<256x2xf32>
    %28 = math.absf %27 : vector<256x2xf32>
    %c0_14 = arith.constant 0 : index
    %c0_15 = arith.constant 0 : index
    %29 = vector.load %arg5[%c0_14, %c0_15] : memref<256x1xf32, #tpu.memory_space<vmem>>, vector<256x1xf32>
    %30 = vector.broadcast %29 : vector<256x1xf32> to vector<256x2xf32>
    %31 = arith.mulf %28, %30 : vector<256x2xf32>
    %32 = vector.shape_cast %31 : vector<256x2xf32> to vector<1x256x2xf32>
    %cst_16 = arith.constant dense<0.000000e+00> : vector<1xf32>
    %33 = vector.multi_reduction <add>, %32, %cst_16 [1, 2] : vector<1x256x2xf32> to vector<1xf32>
    %34 = vector.shape_cast %33 : vector<1xf32> to vector<1x1x1xf32>
    %35 = vector.extract %34[0, 0, 0] : f32 from vector<1x1x1xf32>
    %c0_17 = arith.constant 0 : index
    %36 = memref.load %arg8[%c0_17] : memref<2xf32, #tpu.memory_space<smem>>
    %37 = arith.addf %36, %25 : f32
    %c0_18 = arith.constant 0 : index
    %38 = memref.load %arg8[%c0_18] : memref<2xf32, #tpu.memory_space<smem>>
    memref.store %37, %arg8[%c0_18] : memref<2xf32, #tpu.memory_space<smem>>
    %c1 = arith.constant 1 : index
    %39 = memref.load %arg8[%c1] : memref<2xf32, #tpu.memory_space<smem>>
    %40 = arith.addf %39, %35 : f32
    %c1_19 = arith.constant 1 : index
    %41 = memref.load %arg8[%c1_19] : memref<2xf32, #tpu.memory_space<smem>>
    memref.store %40, %arg8[%c1_19] : memref<2xf32, #tpu.memory_space<smem>>
    %c0_20 = arith.constant 0 : index
    %42 = memref.load %arg8[%c0_20] : memref<2xf32, #tpu.memory_space<smem>>
    %cst_21 = arith.constant 0.001953125 : f32
    %43 = arith.mulf %42, %cst_21 : f32
    %c0_22 = arith.constant 0 : index
    %c0_23 = arith.constant 0 : index
    %44 = memref.load %arg7[%c0_22, %c0_23] : memref<1x2xf32, #tpu.memory_space<smem>>
    memref.store %43, %arg7[%c0_22, %c0_23] : memref<1x2xf32, #tpu.memory_space<smem>>
    %c1_24 = arith.constant 1 : index
    %45 = memref.load %arg8[%c1_24] : memref<2xf32, #tpu.memory_space<smem>>
    %cst_25 = arith.constant 7.812500e-03 : f32
    %46 = arith.mulf %45, %cst_25 : f32
    %c0_26 = arith.constant 0 : index
    %c1_27 = arith.constant 1 : index
    %47 = memref.load %arg7[%c0_26, %c1_27] : memref<1x2xf32, #tpu.memory_space<smem>>
    memref.store %46, %arg7[%c0_26, %c1_27] : memref<1x2xf32, #tpu.memory_space<smem>>
    return
  }
  func.func @transform_0(%arg0: i32) -> (i32, i32) {
    %c0_i32 = arith.constant 0 : i32
    %c0_i32_0 = arith.constant 0 : i32
    %c0_i32_1 = arith.constant 0 : i32
    return %c0_i32, %c0_i32_0 : i32, i32
  }
  func.func @transform_1(%arg0: i32) -> (i32, i32) {
    %c0_i32 = arith.constant 0 : i32
    %c0_i32_0 = arith.constant 0 : i32
    return %c0_i32, %arg0 : i32, i32
  }
  func.func @transform_2(%arg0: i32) -> (i32, i32) {
    %c0_i32 = arith.constant 0 : i32
    %c0_i32_0 = arith.constant 0 : i32
    return %c0_i32, %arg0 : i32, i32
  }
  func.func @transform_3(%arg0: i32) -> (i32, i32) {
    %c0_i32 = arith.constant 0 : i32
    %c0_i32_0 = arith.constant 0 : i32
    return %c0_i32, %arg0 : i32, i32
  }
  func.func @transform_4(%arg0: i32) -> (i32, i32) {
    %c0_i32 = arith.constant 0 : i32
    %c0_i32_0 = arith.constant 0 : i32
    %c0_i32_1 = arith.constant 0 : i32
    return %c0_i32, %c0_i32_0 : i32, i32
  }
  func.func @transform_5(%arg0: i32) -> (i32, i32) {
    %c0_i32 = arith.constant 0 : i32
    %c0_i32_0 = arith.constant 0 : i32
    %c0_i32_1 = arith.constant 0 : i32
    return %c0_i32, %c0_i32_0 : i32, i32
  }
  func.func @transform_6(%arg0: i32) -> (i32, i32) {
    %c0_i32 = arith.constant 0 : i32
    %c0_i32_0 = arith.constant 0 : i32
    %c0_i32_1 = arith.constant 0 : i32
    return %c0_i32, %c0_i32_0 : i32, i32
  }
}

</mosaic_0001>

<llo_original>
// kernel: tpu_custom_call.1
$region0: #{tpu_custom_call.1}
  #allocation0 [shape = 'u32[]', space=smem, size = 0x4, offset = 0x4, fixed_abs, tag = 'smem constant byte address 0x4 - core index']
  #allocation1 [shape = 'u32[144,128]{1,0:T(1,128)}', space=vmem, size = 0x12000, scoped, tag = 'internal scratch']
  #allocation2 [shape = 'f32[2]{0:T(128)}', space=smem, size = 0x200, scoped, tag = 'scratch operand']
  %s0 = inlined_call_operand.vmem [shape: f32[256,256], index: 0, kind: input, shape index: {}]
  %s1 = inlined_call_operand.vmem [shape: f32[256,2], index: 1, kind: input, shape index: {}]
  %s2 = inlined_call_operand.vmem [shape: f32[256,2], index: 2, kind: input, shape index: {}]
  %s3 = inlined_call_operand.vmem [shape: f32[1,2], index: 3, kind: input, shape index: {}]
  %s4 = inlined_call_operand.vmem [shape: f32[256,1], index: 4, kind: input, shape index: {}]
  %s5 = inlined_call_operand.vmem [shape: f32[256,1], index: 5, kind: input, shape index: {}]
  %s6 = inlined_call_operand.hbm [shape: f32[1,2], index: 6, kind: output, shape index: {}]
  %s7 = sld [smem:[#allocation0]]
  $region38: #{tpu_custom_call.1} parent=0
    _
  %s9 = ssub.s32 1, %s7
  %s10 = scalar_select 0, %s9, %s7
  $region1: #{tpu_custom_call.1} parent=0
    #allocation3 [shape = 'u8[512]{0}', space=smem, size = 0x200, scoped, tag = 'output window, operand 0, single buffered']
    #allocation4 [shape = 's32[1]{0}', space=sflag, size = 0x4, scoped, tag = 'scoped memory for tpu_custom_call.1']
    %11 = vsyncpa [#allocation4], 0
    // Predicated region
    $region2: #{tpu_custom_call.1} parent=1 // pred_check
      _
    $region3: #{tpu_custom_call.1} parent=1 // pred_check_branch
      %13 = sbr.rel (0) target = $region5
    $region4: #{tpu_custom_call.1} parent=1 // pred_region
      _
    $region5: #{tpu_custom_call.1} parent=1 // pred_fallthru
      _
    // Predicated region
    $region6: #{tpu_custom_call.1} parent=1 // pred_check
      _
    $region7: #{tpu_custom_call.1} parent=1 // pred_check_branch
      %15 = sbr.rel (0) target = $region9
    $region8: #{tpu_custom_call.1} parent=1 // pred_region
      _
    $region9: #{tpu_custom_call.1} parent=1 // pred_fallthru
      _
    // Predicated region
    $region10: #{tpu_custom_call.1} parent=1 // pred_check
      _
    $region11: #{tpu_custom_call.1} parent=1 // pred_check_branch
      %17 = sbr.rel (0) target = $region13
    $region12: #{tpu_custom_call.1} parent=1 // pred_region
      _
    $region13: #{tpu_custom_call.1} parent=1 // pred_fallthru
      _
    // Predicated region
    $region14: #{tpu_custom_call.1} parent=1 // pred_check
      _
    $region15: #{tpu_custom_call.1} parent=1 // pred_check_branch
      %19 = sbr.rel (0) target = $region17
    $region16: #{tpu_custom_call.1} parent=1 // pred_region
      _
    $region17: #{tpu_custom_call.1} parent=1 // pred_fallthru
      _
    // Predicated region
    $region18: #{tpu_custom_call.1} parent=1 // pred_check
      _
    $region19: #{tpu_custom_call.1} parent=1 // pred_check_branch
      %21 = sbr.rel (0) target = $region21
    $region20: #{tpu_custom_call.1} parent=1 // pred_region
      _
    $region21: #{tpu_custom_call.1} parent=1 // pred_fallthru
      _
    // Predicated region
    $region22: #{tpu_custom_call.1} parent=1 // pred_check
      _
    $region23: #{tpu_custom_call.1} parent=1 // pred_check_branch
      %23 = sbr.rel (0) target = $region25
    $region24: #{tpu_custom_call.1} parent=1 // pred_region
      _
    $region25: #{tpu_custom_call.1} parent=1 // pred_fallthru
      _
    %p24 = scmp.eq.s32.totalorder 0, 0
    // Predicated region
    $region26: #{tpu_custom_call.1} parent=1 // pred_check
      %p25 = pneg %p24
    $region27: #{tpu_custom_call.1} parent=1 // pred_check_branch
      %27 = sbr.rel (%p25) target = $region29
    $region28: #{tpu_custom_call.1} parent=1 // pred_region
      %s28 = scalar_lea.smem [#allocation2], 0
      %29 = sst [smem:[%s28]] 0.0
      %s30 = scalar_lea.smem [#allocation2], 1
      %31 = sst [smem:[%s30]] 0.0
    $region29: #{tpu_custom_call.1} parent=1 // pred_fallthru
      _
    %v32 = vld [vmem:[%s1] sm:$0xff]
    %v33 = vld [vmem:[%s1 + $0x8] sm:$0xff]
    %v34 = vld [vmem:[%s1 + $0x10] sm:$0xff]
    %v35 = vld [vmem:[%s1 + $0x18] sm:$0xff]
    %v36 = vld [vmem:[%s1 + $0x20] sm:$0xff]
    %v37 = vld [vmem:[%s1 + $0x28] sm:$0xff]
    %v38 = vld [vmem:[%s1 + $0x30] sm:$0xff]
    %v39 = vld [vmem:[%s1 + $0x38] sm:$0xff]
    %v40 = vld [vmem:[%s1 + $0x40] sm:$0xff]
    %v41 = vld [vmem:[%s1 + $0x48] sm:$0xff]
    %v42 = vld [vmem:[%s1 + $0x50] sm:$0xff]
    %v43 = vld [vmem:[%s1 + $0x58] sm:$0xff]
    %v44 = vld [vmem:[%s1 + $0x60] sm:$0xff]
    %v45 = vld [vmem:[%s1 + $0x68] sm:$0xff]
    %v46 = vld [vmem:[%s1 + $0x70] sm:$0xff]
    %v47 = vld [vmem:[%s1 + $0x78] sm:$0xff]
    %v48 = vld [vmem:[%s1 + $0x80] sm:$0xff]
    %v49 = vld [vmem:[%s1 + $0x88] sm:$0xff]
    %v50 = vld [vmem:[%s1 + $0x90] sm:$0xff]
    %v51 = vld [vmem:[%s1 + $0x98] sm:$0xff]
    %v52 = vld [vmem:[%s1 + $0xa0] sm:$0xff]
    %v53 = vld [vmem:[%s1 + $0xa8] sm:$0xff]
    %v54 = vld [vmem:[%s1 + $0xb0] sm:$0xff]
    %v55 = vld [vmem:[%s1 + $0xb8] sm:$0xff]
    %v56 = vld [vmem:[%s1 + $0xc0] sm:$0xff]
    %v57 = vld [vmem:[%s1 + $0xc8] sm:$0xff]
    %v58 = vld [vmem:[%s1 + $0xd0] sm:$0xff]
    %v59 = vld [vmem:[%s1 + $0xd8] sm:$0xff]
    %v60 = vld [vmem:[%s1 + $0xe0] sm:$0xff]
    %v61 = vld [vmem:[%s1 + $0xe8] sm:$0xff]
    %v62 = vld [vmem:[%s1 + $0xf0] sm:$0xff]
    %v63 = vld [vmem:[%s1 + $0xf8] sm:$0xff]
    %v64 = vadd.f32 %v32, 0.25
    %v65 = vadd.f32 %v33, 0.25
    %v66 = vadd.f32 %v34, 0.25
    %v67 = vadd.f32 %v35, 0.25
    %v68 = vadd.f32 %v36, 0.25
    %v69 = vadd.f32 %v37, 0.25
    %v70 = vadd.f32 %v38, 0.25
    %v71 = vadd.f32 %v39, 0.25
    %v72 = vadd.f32 %v40, 0.25
    %v73 = vadd.f32 %v41, 0.25
    %v74 = vadd.f32 %v42, 0.25
    %v75 = vadd.f32 %v43, 0.25
    %v76 = vadd.f32 %v44, 0.25
    %v77 = vadd.f32 %v45, 0.25
    %v78 = vadd.f32 %v46, 0.25
    %v79 = vadd.f32 %v47, 0.25
    %v80 = vadd.f32 %v48, 0.25
    %v81 = vadd.f32 %v49, 0.25
    %v82 = vadd.f32 %v50, 0.25
    %v83 = vadd.f32 %v51, 0.25
    %v84 = vadd.f32 %v52, 0.25
    %v85 = vadd.f32 %v53, 0.25
    %v86 = vadd.f32 %v54, 0.25
    %v87 = vadd.f32 %v55, 0.25
    %v88 = vadd.f32 %v56, 0.25
    %v89 = vadd.f32 %v57, 0.25
    %v90 = vadd.f32 %v58, 0.25
    %v91 = vadd.f32 %v59, 0.25
    %v92 = vadd.f32 %v60, 0.25
    %v93 = vadd.f32 %v61, 0.25
    %v94 = vadd.f32 %v62, 0.25
    %v95 = vadd.f32 %v63, 0.25
    %v96 = vld [vmem:[%s2] sm:$0xff]
    %v97 = vld [vmem:[%s2 + $0x8] sm:$0xff]
    %v98 = vld [vmem:[%s2 + $0x10] sm:$0xff]
    %v99 = vld [vmem:[%s2 + $0x18] sm:$0xff]
    %v100 = vld [vmem:[%s2 + $0x20] sm:$0xff]
    %v101 = vld [vmem:[%s2 + $0x28] sm:$0xff]
    %v102 = vld [vmem:[%s2 + $0x30] sm:$0xff]
    %v103 = vld [vmem:[%s2 + $0x38] sm:$0xff]
    %v104 = vld [vmem:[%s2 + $0x40] sm:$0xff]
    %v105 = vld [vmem:[%s2 + $0x48] sm:$0xff]
    %v106 = vld [vmem:[%s2 + $0x50] sm:$0xff]
    %v107 = vld [vmem:[%s2 + $0x58] sm:$0xff]
    %v108 = vld [vmem:[%s2 + $0x60] sm:$0xff]
    %v109 = vld [vmem:[%s2 + $0x68] sm:$0xff]
    %v110 = vld [vmem:[%s2 + $0x70] sm:$0xff]
    %v111 = vld [vmem:[%s2 + $0x78] sm:$0xff]
    %v112 = vld [vmem:[%s2 + $0x80] sm:$0xff]
    %v113 = vld [vmem:[%s2 + $0x88] sm:$0xff]
    %v114 = vld [vmem:[%s2 + $0x90] sm:$0xff]
    %v115 = vld [vmem:[%s2 + $0x98] sm:$0xff]
    %v116 = vld [vmem:[%s2 + $0xa0] sm:$0xff]
    %v117 = vld [vmem:[%s2 + $0xa8] sm:$0xff]
    %v118 = vld [vmem:[%s2 + $0xb0] sm:$0xff]
    %v119 = vld [vmem:[%s2 + $0xb8] sm:$0xff]
    %v120 = vld [vmem:[%s2 + $0xc0] sm:$0xff]
    %v121 = vld [vmem:[%s2 + $0xc8] sm:$0xff]
    %v122 = vld [vmem:[%s2 + $0xd0] sm:$0xff]
    %v123 = vld [vmem:[%s2 + $0xd8] sm:$0xff]
    %v124 = vld [vmem:[%s2 + $0xe0] sm:$0xff]
    %v125 = vld [vmem:[%s2 + $0xe8] sm:$0xff]
    %v126 = vld [vmem:[%s2 + $0xf0] sm:$0xff]
    %v127 = vld [vmem:[%s2 + $0xf8] sm:$0xff]
    %v128 = vmul.f32 %v96, 1.5
    %v129 = vmul.f32 %v97, 1.5
    %v130 = vmul.f32 %v98, 1.5
    %v131 = vmul.f32 %v99, 1.5
    %v132 = vmul.f32 %v100, 1.5
    %v133 = vmul.f32 %v101, 1.5
    %v134 = vmul.f32 %v102, 1.5
    %v135 = vmul.f32 %v103, 1.5
    %v136 = vmul.f32 %v104, 1.5
    %v137 = vmul.f32 %v105, 1.5
    %v138 = vmul.f32 %v106, 1.5
    %v139 = vmul.f32 %v107, 1.5
    %v140 = vmul.f32 %v108, 1.5
    %v141 = vmul.f32 %v109, 1.5
    %v142 = vmul.f32 %v110, 1.5
    %v143 = vmul.f32 %v111, 1.5
    %v144 = vmul.f32 %v112, 1.5
    %v145 = vmul.f32 %v113, 1.5
    %v146 = vmul.f32 %v114, 1.5
    %v147 = vmul.f32 %v115, 1.5
    %v148 = vmul.f32 %v116, 1.5
    %v149 = vmul.f32 %v117, 1.5
    %v150 = vmul.f32 %v118, 1.5
    %v151 = vmul.f32 %v119, 1.5
    %v152 = vmul.f32 %v120, 1.5
    %v153 = vmul.f32 %v121, 1.5
    %v154 = vmul.f32 %v122, 1.5
    %v155 = vmul.f32 %v123, 1.5
    %v156 = vmul.f32 %v124, 1.5
    %v157 = vmul.f32 %v125, 1.5
    %v158 = vmul.f32 %v126, 1.5
    %v159 = vmul.f32 %v127, 1.5
    %v160 = vadd.f32 %v128, 0.1
    %v161 = vadd.f32 %v129, 0.1
    %v162 = vadd.f32 %v130, 0.1
    %v163 = vadd.f32 %v131, 0.1
    %v164 = vadd.f32 %v132, 0.1
    %v165 = vadd.f32 %v133, 0.1
    %v166 = vadd.f32 %v134, 0.1
    %v167 = vadd.f32 %v135, 0.1
    %v168 = vadd.f32 %v136, 0.1
    %v169 = vadd.f32 %v137, 0.1
    %v170 = vadd.f32 %v138, 0.1
    %v171 = vadd.f32 %v139, 0.1
    %v172 = vadd.f32 %v140, 0.1
    %v173 = vadd.f32 %v141, 0.1
    %v174 = vadd.f32 %v142, 0.1
    %v175 = vadd.f32 %v143, 0.1
    %v176 = vadd.f32 %v144, 0.1
    %v177 = vadd.f32 %v145, 0.1
    %v178 = vadd.f32 %v146, 0.1
    %v179 = vadd.f32 %v147, 0.1
    %v180 = vadd.f32 %v148, 0.1
    %v181 = vadd.f32 %v149, 0.1
    %v182 = vadd.f32 %v150, 0.1
    %v183 = vadd.f32 %v151, 0.1
    %v184 = vadd.f32 %v152, 0.1
    %v185 = vadd.f32 %v153, 0.1
    %v186 = vadd.f32 %v154, 0.1
    %v187 = vadd.f32 %v155, 0.1
    %v188 = vadd.f32 %v156, 0.1
    %v189 = vadd.f32 %v157, 0.1
    %v190 = vadd.f32 %v158, 0.1
    %v191 = vadd.f32 %v159, 0.1
    %v192 = vld [vmem:[%s3] sm:$0x1]
    %v193 = vadd.f32 %v192, 0.25
    %v194 = vld [vmem:[%s0] sm:$0xff]
    %v195 = vld [vmem:[%s0 + $0x8] sm:$0xff]
    %v196 = vld [vmem:[%s0 + $0x10] sm:$0xff]
    %v197 = vld [vmem:[%s0 + $0x18] sm:$0xff]
    %v198 = vld [vmem:[%s0 + $0x20] sm:$0xff]
    %v199 = vld [vmem:[%s0 + $0x28] sm:$0xff]
    %v200 = vld [vmem:[%s0 + $0x30] sm:$0xff]
    %v201 = vld [vmem:[%s0 + $0x38] sm:$0xff]
    %v202 = vld [vmem:[%s0 + $0x40] sm:$0xff]
    %v203 = vld [vmem:[%s0 + $0x48] sm:$0xff]
    %v204 = vld [vmem:[%s0 + $0x50] sm:$0xff]
    %v205 = vld [vmem:[%s0 + $0x58] sm:$0xff]
    %v206 = vld [vmem:[%s0 + $0x60] sm:$0xff]
    %v207 = vld [vmem:[%s0 + $0x68] sm:$0xff]
    %v208 = vld [vmem:[%s0 + $0x70] sm:$0xff]
    %v209 = vld [vmem:[%s0 + $0x78] sm:$0xff]
    %v210 = vld [vmem:[%s0 + $0x80] sm:$0xff]
    %v211 = vld [vmem:[%s0 + $0x88] sm:$0xff]
    %v212 = vld [vmem:[%s0 + $0x90] sm:$0xff]
    %v213 = vld [vmem:[%s0 + $0x98] sm:$0xff]
    %v214 = vld [vmem:[%s0 + $0xa0] sm:$0xff]
    %v215 = vld [vmem:[%s0 + $0xa8] sm:$0xff]
    %v216 = vld [vmem:[%s0 + $0xb0] sm:$0xff]
    %v217 = vld [vmem:[%s0 + $0xb8] sm:$0xff]
    %v218 = vld [vmem:[%s0 + $0xc0] sm:$0xff]
    %v219 = vld [vmem:[%s0 + $0xc8] sm:$0xff]
    %v220 = vld [vmem:[%s0 + $0xd0] sm:$0xff]
    %v221 = vld [vmem:[%s0 + $0xd8] sm:$0xff]
    %v222 = vld [vmem:[%s0 + $0xe0] sm:$0xff]
    %v223 = vld [vmem:[%s0 + $0xe8] sm:$0xff]
    %v224 = vld [vmem:[%s0 + $0xf0] sm:$0xff]
    %v225 = vld [vmem:[%s0 + $0xf8] sm:$0xff]
    %v226 = vld [vmem:[%s0 + $0x100] sm:$0xff]
    %v227 = vld [vmem:[%s0 + $0x108] sm:$0xff]
    %v228 = vld [vmem:[%s0 + $0x110] sm:$0xff]
    %v229 = vld [vmem:[%s0 + $0x118] sm:$0xff]
    %v230 = vld [vmem:[%s0 + $0x120] sm:$0xff]
    %v231 = vld [vmem:[%s0 + $0x128] sm:$0xff]
    %v232 = vld [vmem:[%s0 + $0x130] sm:$0xff]
    %v233 = vld [vmem:[%s0 + $0x138] sm:$0xff]
    %v234 = vld [vmem:[%s0 + $0x140] sm:$0xff]
    %v235 = vld [vmem:[%s0 + $0x148] sm:$0xff]
    %v236 = vld [vmem:[%s0 + $0x150] sm:$0xff]
    %v237 = vld [vmem:[%s0 + $0x158] sm:$0xff]
    %v238 = vld [vmem:[%s0 + $0x160] sm:$0xff]
    %v239 = vld [vmem:[%s0 + $0x168] sm:$0xff]
    %v240 = vld [vmem:[%s0 + $0x170] sm:$0xff]
    %v241 = vld [vmem:[%s0 + $0x178] sm:$0xff]
    %v242 = vld [vmem:[%s0 + $0x180] sm:$0xff]
    %v243 = vld [vmem:[%s0 + $0x188] sm:$0xff]
    %v244 = vld [vmem:[%s0 + $0x190] sm:$0xff]
    %v245 = vld [vmem:[%s0 + $0x198] sm:$0xff]
    %v246 = vld [vmem:[%s0 + $0x1a0] sm:$0xff]
    %v247 = vld [vmem:[%s0 + $0x1a8] sm:$0xff]
    %v248 = vld [vmem:[%s0 + $0x1b0] sm:$0xff]
    %v249 = vld [vmem:[%s0 + $0x1b8] sm:$0xff]
    %v250 = vld [vmem:[%s0 + $0x1c0] sm:$0xff]
    %v251 = vld [vmem:[%s0 + $0x1c8] sm:$0xff]
    %v252 = vld [vmem:[%s0 + $0x1d0] sm:$0xff]
    %v253 = vld [vmem:[%s0 + $0x1d8] sm:$0xff]
    %v254 = vld [vmem:[%s0 + $0x1e0] sm:$0xff]
    %v255 = vld [vmem:[%s0 + $0x1e8] sm:$0xff]
    %v256 = vld [vmem:[%s0 + $0x1f0] sm:$0xff]
    %v257 = vld [vmem:[%s0 + $0x1f8] sm:$0xff]
    %v258 = vmul.f32 %v64, %v64
    %v259 = vmul.f32 %v65, %v65
    %v260 = vmul.f32 %v66, %v66
    %v261 = vmul.f32 %v67, %v67
    %v262 = vmul.f32 %v68, %v68
    %v263 = vmul.f32 %v69, %v69
    %v264 = vmul.f32 %v70, %v70
    %v265 = vmul.f32 %v71, %v71
    %v266 = vmul.f32 %v72, %v72
    %v267 = vmul.f32 %v73, %v73
    %v268 = vmul.f32 %v74, %v74
    %v269 = vmul.f32 %v75, %v75
    %v270 = vmul.f32 %v76, %v76
    %v271 = vmul.f32 %v77, %v77
    %v272 = vmul.f32 %v78, %v78
    %v273 = vmul.f32 %v79, %v79
    %v274 = vmul.f32 %v80, %v80
    %v275 = vmul.f32 %v81, %v81
    %v276 = vmul.f32 %v82, %v82
    %v277 = vmul.f32 %v83, %v83
    %v278 = vmul.f32 %v84, %v84
    %v279 = vmul.f32 %v85, %v85
    %v280 = vmul.f32 %v86, %v86
    %v281 = vmul.f32 %v87, %v87
    %v282 = vmul.f32 %v88, %v88
    %v283 = vmul.f32 %v89, %v89
    %v284 = vmul.f32 %v90, %v90
    %v285 = vmul.f32 %v91, %v91
    %v286 = vmul.f32 %v92, %v92
    %v287 = vmul.f32 %v93, %v93
    %v288 = vmul.f32 %v94, %v94
    %v289 = vmul.f32 %v95, %v95
    %v290 = vmul.f32 %v258, 61.685028
    %v291 = vmul.f32 %v259, 61.685028
    %v292 = vmul.f32 %v260, 61.685028
    %v293 = vmul.f32 %v261, 61.685028
    %v294 = vmul.f32 %v262, 61.685028
    %v295 = vmul.f32 %v263, 61.685028
    %v296 = vmul.f32 %v264, 61.685028
    %v297 = vmul.f32 %v265, 61.685028
    %v298 = vmul.f32 %v266, 61.685028
    %v299 = vmul.f32 %v267, 61.685028
    %v300 = vmul.f32 %v268, 61.685028
    %v301 = vmul.f32 %v269, 61.685028
    %v302 = vmul.f32 %v270, 61.685028
    %v303 = vmul.f32 %v271, 61.685028
    %v304 = vmul.f32 %v272, 61.685028
    %v305 = vmul.f32 %v273, 61.685028
    %v306 = vmul.f32 %v274, 61.685028
    %v307 = vmul.f32 %v275, 61.685028
    %v308 = vmul.f32 %v276, 61.685028
    %v309 = vmul.f32 %v277, 61.685028
    %v310 = vmul.f32 %v278, 61.685028
    %v311 = vmul.f32 %v279, 61.685028
    %v312 = vmul.f32 %v280, 61.685028
    %v313 = vmul.f32 %v281, 61.685028
    %v314 = vmul.f32 %v282, 61.685028
    %v315 = vmul.f32 %v283, 61.685028
    %v316 = vmul.f32 %v284, 61.685028
    %v317 = vmul.f32 %v285, 61.685028
    %v318 = vmul.f32 %v286, 61.685028
    %v319 = vmul.f32 %v287, 61.685028
    %v320 = vmul.f32 %v288, 61.685028
    %v321 = vmul.f32 %v289, 61.685028
    %v322 = vmul.f32 %v290, %v160
    %v323 = vmul.f32 %v291, %v161
    %v324 = vmul.f32 %v292, %v162
    %v325 = vmul.f32 %v293, %v163
    %v326 = vmul.f32 %v294, %v164
    %v327 = vmul.f32 %v295, %v165
    %v328 = vmul.f32 %v296, %v166
    %v329 = vmul.f32 %v297, %v167
    %v330 = vmul.f32 %v298, %v168
    %v331 = vmul.f32 %v299, %v169
    %v332 = vmul.f32 %v300, %v170
    %v333 = vmul.f32 %v301, %v171
    %v334 = vmul.f32 %v302, %v172
    %v335 = vmul.f32 %v303, %v173
    %v336 = vmul.f32 %v304, %v174
    %v337 = vmul.f32 %v305, %v175
    %v338 = vmul.f32 %v306, %v176
    %v339 = vmul.f32 %v307, %v177
    %v340 = vmul.f32 %v308, %v178
    %v341 = vmul.f32 %v309, %v179
    %v342 = vmul.f32 %v310, %v180
    %v343 = vmul.f32 %v311, %v181
    %v344 = vmul.f32 %v312, %v182
    %v345 = vmul.f32 %v313, %v183
    %v346 = vmul.f32 %v314, %v184
    %v347 = vmul.f32 %v315, %v185
    %v348 = vmul.f32 %v316, %v186
    %v349 = vmul.f32 %v317, %v187
    %v350 = vmul.f32 %v318, %v188
    %v351 = vmul.f32 %v319, %v189
    %v352 = vmul.f32 %v320, %v190
    %v353 = vmul.f32 %v321, %v191
    %354 = vmatprep.subr.mxu0 0.0
    %355 = vmatpush1.msra.mxu0 %v175
    %356 = vmatprep.subr.mxu0 0.0
    %357 = vmatpush1.msra.mxu0 %v174
    %358 = vmatprep.subr.mxu0 0.0
    %359 = vmatpush1.msra.mxu0 %v173
    %360 = vmatprep.subr.mxu0 0.0
    %361 = vmatpush1.msra.mxu0 %v172
    %362 = vmatprep.subr.mxu0 0.0
    %363 = vmatpush1.msra.mxu0 %v171
    %364 = vmatprep.subr.mxu0 0.0
    %365 = vmatpush1.msra.mxu0 %v170
    %366 = vmatprep.subr.mxu0 0.0
    %367 = vmatpush1.msra.mxu0 %v169
    %368 = vmatprep.subr.mxu0 0.0
    %369 = vmatpush1.msra.mxu0 %v168
    %370 = vmatprep.subr.mxu0 0.0
    %371 = vmatpush1.msra.mxu0 %v167
    %372 = vmatprep.subr.mxu0 0.0
    %373 = vmatpush1.msra.mxu0 %v166
    %374 = vmatprep.subr.mxu0 0.0
    %375 = vmatpush1.msra.mxu0 %v165
    %376 = vmatprep.subr.mxu0 0.0
    %377 = vmatpush1.msra.mxu0 %v164
    %378 = vmatprep.subr.mxu0 0.0
    %379 = vmatpush1.msra.mxu0 %v163
    %380 = vmatprep.subr.mxu0 0.0
    %381 = vmatpush1.msra.mxu0 %v162
    %382 = vmatprep.subr.mxu0 0.0
    %383 = vmatpush1.msra.mxu0 %v161
    %384 = vmatprep.subr.mxu0 0.0
    %385 = vmatpush1.msra.mxu0 %v160
    %386 = vmatprep.subr.mxu0 0.0
    %387 = vmatpush2.msra.mxu0 %v191
    %388 = vmatprep.subr.mxu0 0.0
    %389 = vmatpush2.msra.mxu0 %v190
    %390 = vmatprep.subr.mxu0 0.0
    %391 = vmatpush2.msra.mxu0 %v189
    %392 = vmatprep.subr.mxu0 0.0
    %393 = vmatpush2.msra.mxu0 %v188
    %394 = vmatprep.subr.mxu0 0.0
    %395 = vmatpush2.msra.mxu0 %v187
    %396 = vmatprep.subr.mxu0 0.0
    %397 = vmatpush2.msra.mxu0 %v186
    %398 = vmatprep.subr.mxu0 0.0
    %399 = vmatpush2.msra.mxu0 %v185
    %400 = vmatprep.subr.mxu0 0.0
    %401 = vmatpush2.msra.mxu0 %v184
    %402 = vmatprep.subr.mxu0 0.0
    %403 = vmatpush2.msra.mxu0 %v183
    %404 = vmatprep.subr.mxu0 0.0
    %405 = vmatpush2.msra.mxu0 %v182
    %406 = vmatprep.subr.mxu0 0.0
    %407 = vmatpush2.msra.mxu0 %v181
    %408 = vmatprep.subr.mxu0 0.0
    %409 = vmatpush2.msra.mxu0 %v180
    %410 = vmatprep.subr.mxu0 0.0
    %411 = vmatpush2.msra.mxu0 %v179
    %412 = vmatprep.subr.mxu0 0.0
    %413 = vmatpush2.msra.mxu0 %v178
    %414 = vmatprep.subr.mxu0 0.0
    %415 = vmatpush2.msra.mxu0 %v177
    %416 = vmatprep.subr.mxu0 0.0
    %417 = vmatpush2.msra.mxu0 %v176
    %418 = vmatprep.mubr.f32.mxu0 %v195
    %419 = vmatmul.mubr.f32.gmra.mxu0 %v194
    %v420 = vpop.f32.mrf.mxu0
    %v421 = vadd.f32 %v322, %v420
    %v422 = vpop.f32.mrf.mxu0
    %423 = vmatprep.mubr.f32.mxu0 %v197
    %424 = vmatmul.mubr.f32.gmra.mxu0 %v196
    %v425 = vpop.f32.mrf.mxu0
    %v426 = vadd.f32 %v323, %v425
    %v427 = vpop.f32.mrf.mxu0
    %428 = vmatprep.mubr.f32.mxu0 %v199
    %429 = vmatmul.mubr.f32.gmra.mxu0 %v198
    %v430 = vpop.f32.mrf.mxu0
    %v431 = vadd.f32 %v324, %v430
    %v432 = vpop.f32.mrf.mxu0
    %433 = vmatprep.mubr.f32.mxu0 %v201
    %434 = vmatmul.mubr.f32.gmra.mxu0 %v200
    %v435 = vpop.f32.mrf.mxu0
    %v436 = vadd.f32 %v325, %v435
    %v437 = vpop.f32.mrf.mxu0
    %438 = vmatprep.mubr.f32.mxu0 %v203
    %439 = vmatmul.mubr.f32.gmra.mxu0 %v202
    %v440 = vpop.f32.mrf.mxu0
    %v441 = vadd.f32 %v326, %v440
    %v442 = vpop.f32.mrf.mxu0
    %443 = vmatprep.mubr.f32.mxu0 %v205
    %444 = vmatmul.mubr.f32.gmra.mxu0 %v204
    %v445 = vpop.f32.mrf.mxu0
    %v446 = vadd.f32 %v327, %v445
    %v447 = vpop.f32.mrf.mxu0
    %448 = vmatprep.mubr.f32.mxu0 %v207
    %449 = vmatmul.mubr.f32.gmra.mxu0 %v206
    %v450 = vpop.f32.mrf.mxu0
    %v451 = vadd.f32 %v328, %v450
    %v452 = vpop.f32.mrf.mxu0
    %453 = vmatprep.mubr.f32.mxu0 %v209
    %454 = vmatmul.mubr.f32.gmra.mxu0 %v208
    %v455 = vpop.f32.mrf.mxu0
    %v456 = vadd.f32 %v329, %v455
    %v457 = vpop.f32.mrf.mxu0
    %458 = vmatprep.mubr.f32.mxu0 %v211
    %459 = vmatmul.mubr.f32.gmra.mxu0 %v210
    %v460 = vpop.f32.mrf.mxu0
    %v461 = vadd.f32 %v330, %v460
    %v462 = vpop.f32.mrf.mxu0
    %463 = vmatprep.mubr.f32.mxu0 %v213
    %464 = vmatmul.mubr.f32.gmra.mxu0 %v212
    %v465 = vpop.f32.mrf.mxu0
    %v466 = vadd.f32 %v331, %v465
    %v467 = vpop.f32.mrf.mxu0
    %468 = vmatprep.mubr.f32.mxu0 %v215
    %469 = vmatmul.mubr.f32.gmra.mxu0 %v214
    %v470 = vpop.f32.mrf.mxu0
    %v471 = vadd.f32 %v332, %v470
    %v472 = vpop.f32.mrf.mxu0
    %473 = vmatprep.mubr.f32.mxu0 %v217
    %474 = vmatmul.mubr.f32.gmra.mxu0 %v216
    %v475 = vpop.f32.mrf.mxu0
    %v476 = vadd.f32 %v333, %v475
    %v477 = vpop.f32.mrf.mxu0
    %478 = vmatprep.mubr.f32.mxu0 %v219
    %479 = vmatmul.mubr.f32.gmra.mxu0 %v218
    %v480 = vpop.f32.mrf.mxu0
    %v481 = vadd.f32 %v334, %v480
    %v482 = vpop.f32.mrf.mxu0
    %483 = vmatprep.mubr.f32.mxu0 %v221
    %484 = vmatmul.mubr.f32.gmra.mxu0 %v220
    %v485 = vpop.f32.mrf.mxu0
    %v486 = vadd.f32 %v335, %v485
    %v487 = vpop.f32.mrf.mxu0
    %488 = vmatprep.mubr.f32.mxu0 %v223
    %489 = vmatmul.mubr.f32.gmra.mxu0 %v222
    %v490 = vpop.f32.mrf.mxu0
    %v491 = vadd.f32 %v336, %v490
    %v492 = vpop.f32.mrf.mxu0
    %493 = vmatprep.mubr.f32.mxu0 %v225
    %494 = vmatmul.mubr.f32.gmra.mxu0 %v224
    %v495 = vpop.f32.mrf.mxu0
    %v496 = vadd.f32 %v337, %v495
    %v497 = vpop.f32.mrf.mxu0
    %498 = vmatprep.mubr.f32.mxu0 %v227
    %499 = vmatmul.mubr.f32.gmra.mxu0 %v226
    %v500 = vpop.f32.mrf.mxu0
    %v501 = vadd.f32 %v338, %v500
    %v502 = vpop.f32.mrf.mxu0
    %503 = vmatprep.mubr.f32.mxu0 %v229
    %504 = vmatmul.mubr.f32.gmra.mxu0 %v228
    %v505 = vpop.f32.mrf.mxu0
    %v506 = vadd.f32 %v339, %v505
    %v507 = vpop.f32.mrf.mxu0
    %508 = vmatprep.mubr.f32.mxu0 %v231
    %509 = vmatmul.mubr.f32.gmra.mxu0 %v230
    %v510 = vpop.f32.mrf.mxu0
    %v511 = vadd.f32 %v340, %v510
    %v512 = vpop.f32.mrf.mxu0
    %513 = vmatprep.mubr.f32.mxu0 %v233
    %514 = vmatmul.mubr.f32.gmra.mxu0 %v232
    %v515 = vpop.f32.mrf.mxu0
    %v516 = vadd.f32 %v341, %v515
    %v517 = vpop.f32.mrf.mxu0
    %518 = vmatprep.mubr.f32.mxu0 %v235
    %519 = vmatmul.mubr.f32.gmra.mxu0 %v234
    %v520 = vpop.f32.mrf.mxu0
    %v521 = vadd.f32 %v342, %v520
    %v522 = vpop.f32.mrf.mxu0
    %523 = vmatprep.mubr.f32.mxu0 %v237
    %524 = vmatmul.mubr.f32.gmra.mxu0 %v236
    %v525 = vpop.f32.mrf.mxu0
    %v526 = vadd.f32 %v343, %v525
    %v527 = vpop.f32.mrf.mxu0
    %528 = vmatprep.mubr.f32.mxu0 %v239
    %529 = vmatmul.mubr.f32.gmra.mxu0 %v238
    %v530 = vpop.f32.mrf.mxu0
    %v531 = vadd.f32 %v344, %v530
    %v532 = vpop.f32.mrf.mxu0
    %533 = vmatprep.mubr.f32.mxu0 %v241
    %534 = vmatmul.mubr.f32.gmra.mxu0 %v240
    %v535 = vpop.f32.mrf.mxu0
    %v536 = vadd.f32 %v345, %v535
    %v537 = vpop.f32.mrf.mxu0
    %538 = vmatprep.mubr.f32.mxu0 %v243
    %539 = vmatmul.mubr.f32.gmra.mxu0 %v242
    %v540 = vpop.f32.mrf.mxu0
    %v541 = vadd.f32 %v346, %v540
    %v542 = vpop.f32.mrf.mxu0
    %543 = vmatprep.mubr.f32.mxu0 %v245
    %544 = vmatmul.mubr.f32.gmra.mxu0 %v244
    %v545 = vpop.f32.mrf.mxu0
    %v546 = vadd.f32 %v347, %v545
    %v547 = vpop.f32.mrf.mxu0
    %548 = vmatprep.mubr.f32.mxu0 %v247
    %549 = vmatmul.mubr.f32.gmra.mxu0 %v246
    %v550 = vpop.f32.mrf.mxu0
    %v551 = vadd.f32 %v348, %v550
    %v552 = vpop.f32.mrf.mxu0
    %553 = vmatprep.mubr.f32.mxu0 %v249
    %554 = vmatmul.mubr.f32.gmra.mxu0 %v248
    %v555 = vpop.f32.mrf.mxu0
    %v556 = vadd.f32 %v349, %v555
    %v557 = vpop.f32.mrf.mxu0
    %558 = vmatprep.mubr.f32.mxu0 %v251
    %559 = vmatmul.mubr.f32.gmra.mxu0 %v250
    %v560 = vpop.f32.mrf.mxu0
    %v561 = vadd.f32 %v350, %v560
    %v562 = vpop.f32.mrf.mxu0
    %563 = vmatprep.mubr.f32.mxu0 %v253
    %564 = vmatmul.mubr.f32.gmra.mxu0 %v252
    %v565 = vpop.f32.mrf.mxu0
    %v566 = vadd.f32 %v351, %v565
    %v567 = vpop.f32.mrf.mxu0
    %568 = vmatprep.mubr.f32.mxu0 %v255
    %569 = vmatmul.mubr.f32.gmra.mxu0 %v254
    %v570 = vpop.f32.mrf.mxu0
    %v571 = vadd.f32 %v352, %v570
    %v572 = vpop.f32.mrf.mxu0
    %573 = vmatprep.mubr.f32.mxu0 %v257
    %574 = vmatmul.mubr.f32.gmra.mxu0 %v256
    %v575 = vpop.f32.mrf.mxu0
    %v576 = vadd.f32 %v353, %v575
    %v577 = vpop.f32.mrf.mxu0
    %578 = vdwg.mxu0
    %v579 = vand.u32 2147483647, %v421
    %v580 = vand.u32 2147483647, %v426
    %v581 = vand.u32 2147483647, %v431
    %v582 = vand.u32 2147483647, %v436
    %v583 = vand.u32 2147483647, %v441
    %v584 = vand.u32 2147483647, %v446
    %v585 = vand.u32 2147483647, %v451
    %v586 = vand.u32 2147483647, %v456
    %v587 = vand.u32 2147483647, %v461
    %v588 = vand.u32 2147483647, %v466
    %v589 = vand.u32 2147483647, %v471
    %v590 = vand.u32 2147483647, %v476
    %v591 = vand.u32 2147483647, %v481
    %v592 = vand.u32 2147483647, %v486
    %v593 = vand.u32 2147483647, %v491
    %v594 = vand.u32 2147483647, %v496
    %v595 = vand.u32 2147483647, %v501
    %v596 = vand.u32 2147483647, %v506
    %v597 = vand.u32 2147483647, %v511
    %v598 = vand.u32 2147483647, %v516
    %v599 = vand.u32 2147483647, %v521
    %v600 = vand.u32 2147483647, %v526
    %v601 = vand.u32 2147483647, %v531
    %v602 = vand.u32 2147483647, %v536
    %v603 = vand.u32 2147483647, %v541
    %v604 = vand.u32 2147483647, %v546
    %v605 = vand.u32 2147483647, %v551
    %v606 = vand.u32 2147483647, %v556
    %v607 = vand.u32 2147483647, %v561
    %v608 = vand.u32 2147483647, %v566
    %v609 = vand.u32 2147483647, %v571
    %v610 = vand.u32 2147483647, %v576
    %vm611 = vcmask 15360
    %v612 = vsel %vm611, %v579, 0.0
    %v613 = vsel %vm611, %v580, 0.0
    %v614 = vadd.f32 %v612, %v613
    %v615 = vsel %vm611, %v581, 0.0
    %v616 = vadd.f32 %v614, %v615
    %v617 = vsel %vm611, %v582, 0.0
    %v618 = vadd.f32 %v616, %v617
    %v619 = vsel %vm611, %v583, 0.0
    %v620 = vadd.f32 %v618, %v619
    %v621 = vsel %vm611, %v584, 0.0
    %v622 = vadd.f32 %v620, %v621
    %v623 = vsel %vm611, %v585, 0.0
    %v624 = vadd.f32 %v622, %v623
    %v625 = vsel %vm611, %v586, 0.0
    %v626 = vadd.f32 %v624, %v625
    %v627 = vsel %vm611, %v587, 0.0
    %v628 = vadd.f32 %v626, %v627
    %v629 = vsel %vm611, %v588, 0.0
    %v630 = vadd.f32 %v628, %v629
    %v631 = vsel %vm611, %v589, 0.0
    %v632 = vadd.f32 %v630, %v631
    %v633 = vsel %vm611, %v590, 0.0
    %v634 = vadd.f32 %v632, %v633
    %v635 = vsel %vm611, %v591, 0.0
    %v636 = vadd.f32 %v634, %v635
    %v637 = vsel %vm611, %v592, 0.0
    %v638 = vadd.f32 %v636, %v637
    %v639 = vsel %vm611, %v593, 0.0
    %v640 = vadd.f32 %v638, %v639
    %v641 = vsel %vm611, %v594, 0.0
    %v642 = vadd.f32 %v640, %v641
    %v643 = vsel %vm611, %v595, 0.0
    %v644 = vadd.f32 %v642, %v643
    %v645 = vsel %vm611, %v596, 0.0
    %v646 = vadd.f32 %v644, %v645
    %v647 = vsel %vm611, %v597, 0.0
    %v648 = vadd.f32 %v646, %v647
    %v649 = vsel %vm611, %v598, 0.0
    %v650 = vadd.f32 %v648, %v649
    %v651 = vsel %vm611, %v599, 0.0
    %v652 = vadd.f32 %v650, %v651
    %v653 = vsel %vm611, %v600, 0.0
    %v654 = vadd.f32 %v652, %v653
    %v655 = vsel %vm611, %v601, 0.0
    %v656 = vadd.f32 %v654, %v655
    %v657 = vsel %vm611, %v602, 0.0
    %v658 = vadd.f32 %v656, %v657
    %v659 = vsel %vm611, %v603, 0.0
    %v660 = vadd.f32 %v658, %v659
    %v661 = vsel %vm611, %v604, 0.0
    %v662 = vadd.f32 %v660, %v661
    %v663 = vsel %vm611, %v605, 0.0
    %v664 = vadd.f32 %v662, %v663
    %v665 = vsel %vm611, %v606, 0.0
    %v666 = vadd.f32 %v664, %v665
    %v667 = vsel %vm611, %v607, 0.0
    %v668 = vadd.f32 %v666, %v667
    %v669 = vsel %vm611, %v608, 0.0
    %v670 = vadd.f32 %v668, %v669
    %v671 = vsel %vm611, %v609, 0.0
    %v672 = vadd.f32 %v670, %v671
    %v673 = vsel %vm611, %v610, 0.0
    %v674 = vadd.f32 %v672, %v673
    %675 = vadd.xlane.f32.xlu0 %v674
    %v676 = vpop.xlane.xlu0 %675
    %v677 = vrot.slane %v676, 4
    %v678 = vadd.f32 %v676, %v677
    %v679 = vrot.slane %v678, 2
    %v680 = vadd.f32 %v678, %v679
    %v681 = vrot.slane %v680, 1
    %v682 = vadd.f32 %v680, %v681
    %s683 = vtos %v682
    %v685 = vlaneseq
    %v686 = vshrl.u32 %v685, 7
    %v687 = vsub.s32 0, %v686
    %v688 = vrot.slane %v193, %v687
    %v690 = vsub.f32 %v160, %v688
    %v691 = vsub.f32 %v161, %v688
    %v692 = vsub.f32 %v162, %v688
    %v693 = vsub.f32 %v163, %v688
    %v694 = vsub.f32 %v164, %v688
    %v695 = vsub.f32 %v165, %v688
    %v696 = vsub.f32 %v166, %v688
    %v697 = vsub.f32 %v167, %v688
    %v698 = vsub.f32 %v168, %v688
    %v699 = vsub.f32 %v169, %v688
    %v700 = vsub.f32 %v170, %v688
    %v701 = vsub.f32 %v171, %v688
    %v702 = vsub.f32 %v172, %v688
    %v703 = vsub.f32 %v173, %v688
    %v704 = vsub.f32 %v174, %v688
    %v705 = vsub.f32 %v175, %v688
    %v706 = vsub.f32 %v176, %v688
    %v707 = vsub.f32 %v177, %v688
    %v708 = vsub.f32 %v178, %v688
    %v709 = vsub.f32 %v179, %v688
    %v710 = vsub.f32 %v180, %v688
    %v711 = vsub.f32 %v181, %v688
    %v712 = vsub.f32 %v182, %v688
    %v713 = vsub.f32 %v183, %v688
    %v714 = vsub.f32 %v184, %v688
    %v715 = vsub.f32 %v185, %v688
    %v716 = vsub.f32 %v186, %v688
    %v717 = vsub.f32 %v187, %v688
    %v718 = vsub.f32 %v188, %v688
    %v719 = vsub.f32 %v189, %v688
    %v720 = vsub.f32 %v190, %v688
    %v721 = vsub.f32 %v191, %v688
    %v722 = vand.u32 2147483647, %v690
    %v723 = vand.u32 2147483647, %v691
    %v724 = vand.u32 2147483647, %v692
    %v725 = vand.u32 2147483647, %v693
    %v726 = vand.u32 2147483647, %v694
    %v727 = vand.u32 2147483647, %v695
    %v728 = vand.u32 2147483647, %v696
    %v729 = vand.u32 2147483647, %v697
    %v730 = vand.u32 2147483647, %v698
    %v731 = vand.u32 2147483647, %v699
    %v732 = vand.u32 2147483647, %v700
    %v733 = vand.u32 2147483647, %v701
    %v734 = vand.u32 2147483647, %v702
    %v735 = vand.u32 2147483647, %v703
    %v736 = vand.u32 2147483647, %v704
    %v737 = vand.u32 2147483647, %v705
    %v738 = vand.u32 2147483647, %v706
    %v739 = vand.u32 2147483647, %v707
    %v740 = vand.u32 2147483647, %v708
    %v741 = vand.u32 2147483647, %v709
    %v742 = vand.u32 2147483647, %v710
    %v743 = vand.u32 2147483647, %v711
    %v744 = vand.u32 2147483647, %v712
    %v745 = vand.u32 2147483647, %v713
    %v746 = vand.u32 2147483647, %v714
    %v747 = vand.u32 2147483647, %v715
    %v748 = vand.u32 2147483647, %v716
    %v749 = vand.u32 2147483647, %v717
    %v750 = vand.u32 2147483647, %v718
    %v751 = vand.u32 2147483647, %v719
    %v752 = vand.u32 2147483647, %v720
    %v753 = vand.u32 2147483647, %v721
    %v754 = vld [vmem:[%s4] sm:$0xff]
    %v755 = vld [vmem:[%s4 + $0x8] sm:$0xff]
    %v756 = vld [vmem:[%s4 + $0x10] sm:$0xff]
    %v757 = vld [vmem:[%s4 + $0x18] sm:$0xff]
    %v758 = vld [vmem:[%s4 + $0x20] sm:$0xff]
    %v759 = vld [vmem:[%s4 + $0x28] sm:$0xff]
    %v760 = vld [vmem:[%s4 + $0x30] sm:$0xff]
    %v761 = vld [vmem:[%s4 + $0x38] sm:$0xff]
    %v762 = vld [vmem:[%s4 + $0x40] sm:$0xff]
    %v763 = vld [vmem:[%s4 + $0x48] sm:$0xff]
    %v764 = vld [vmem:[%s4 + $0x50] sm:$0xff]
    %v765 = vld [vmem:[%s4 + $0x58] sm:$0xff]
    %v766 = vld [vmem:[%s4 + $0x60] sm:$0xff]
    %v767 = vld [vmem:[%s4 + $0x68] sm:$0xff]
    %v768 = vld [vmem:[%s4 + $0x70] sm:$0xff]
    %v769 = vld [vmem:[%s4 + $0x78] sm:$0xff]
    %v770 = vld [vmem:[%s4 + $0x80] sm:$0xff]
    %v771 = vld [vmem:[%s4 + $0x88] sm:$0xff]
    %v772 = vld [vmem:[%s4 + $0x90] sm:$0xff]
    %v773 = vld [vmem:[%s4 + $0x98] sm:$0xff]
    %v774 = vld [vmem:[%s4 + $0xa0] sm:$0xff]
    %v775 = vld [vmem:[%s4 + $0xa8] sm:$0xff]
    %v776 = vld [vmem:[%s4 + $0xb0] sm:$0xff]
    %v777 = vld [vmem:[%s4 + $0xb8] sm:$0xff]
    %v778 = vld [vmem:[%s4 + $0xc0] sm:$0xff]
    %v779 = vld [vmem:[%s4 + $0xc8] sm:$0xff]
    %v780 = vld [vmem:[%s4 + $0xd0] sm:$0xff]
    %v781 = vld [vmem:[%s4 + $0xd8] sm:$0xff]
    %v782 = vld [vmem:[%s4 + $0xe0] sm:$0xff]
    %v783 = vld [vmem:[%s4 + $0xe8] sm:$0xff]
    %v784 = vld [vmem:[%s4 + $0xf0] sm:$0xff]
    %v785 = vld [vmem:[%s4 + $0xf8] sm:$0xff]
    %787 = vset.pattern.permute.xlu0 0
    %788 = vperm.xlu0 %787, %v754
    %v789 = vpop.permute.xlu0 %788
    %792 = vset.pattern.permute.xlu0 0
    %793 = vperm.xlu0 %792, %v755
    %v794 = vpop.permute.xlu0 %793
    %797 = vset.pattern.permute.xlu0 0
    %798 = vperm.xlu0 %797, %v756
    %v799 = vpop.permute.xlu0 %798
    %802 = vset.pattern.permute.xlu0 0
    %803 = vperm.xlu0 %802, %v757
    %v804 = vpop.permute.xlu0 %803
    %807 = vset.pattern.permute.xlu0 0
    %808 = vperm.xlu0 %807, %v758
    %v809 = vpop.permute.xlu0 %808
    %812 = vset.pattern.permute.xlu0 0
    %813 = vperm.xlu0 %812, %v759
    %v814 = vpop.permute.xlu0 %813
    %817 = vset.pattern.permute.xlu0 0
    %818 = vperm.xlu0 %817, %v760
    %v819 = vpop.permute.xlu0 %818
    %822 = vset.pattern.permute.xlu0 0
    %823 = vperm.xlu0 %822, %v761
    %v824 = vpop.permute.xlu0 %823
    %827 = vset.pattern.permute.xlu0 0
    %828 = vperm.xlu0 %827, %v762
    %v829 = vpop.permute.xlu0 %828
    %832 = vset.pattern.permute.xlu0 0
    %833 = vperm.xlu0 %832, %v763
    %v834 = vpop.permute.xlu0 %833
    %837 = vset.pattern.permute.xlu0 0
    %838 = vperm.xlu0 %837, %v764
    %v839 = vpop.permute.xlu0 %838
    %842 = vset.pattern.permute.xlu0 0
    %843 = vperm.xlu0 %842, %v765
    %v844 = vpop.permute.xlu0 %843
    %847 = vset.pattern.permute.xlu0 0
    %848 = vperm.xlu0 %847, %v766
    %v849 = vpop.permute.xlu0 %848
    %852 = vset.pattern.permute.xlu0 0
    %853 = vperm.xlu0 %852, %v767
    %v854 = vpop.permute.xlu0 %853
    %857 = vset.pattern.permute.xlu0 0
    %858 = vperm.xlu0 %857, %v768
    %v859 = vpop.permute.xlu0 %858
    %862 = vset.pattern.permute.xlu0 0
    %863 = vperm.xlu0 %862, %v769
    %v864 = vpop.permute.xlu0 %863
    %867 = vset.pattern.permute.xlu0 0
    %868 = vperm.xlu0 %867, %v770
    %v869 = vpop.permute.xlu0 %868
    %872 = vset.pattern.permute.xlu0 0
    %873 = vperm.xlu0 %872, %v771
    %v874 = vpop.permute.xlu0 %873
    %877 = vset.pattern.permute.xlu0 0
    %878 = vperm.xlu0 %877, %v772
    %v879 = vpop.permute.xlu0 %878
    %882 = vset.pattern.permute.xlu0 0
    %883 = vperm.xlu0 %882, %v773
    %v884 = vpop.permute.xlu0 %883
    %887 = vset.pattern.permute.xlu0 0
    %888 = vperm.xlu0 %887, %v774
    %v889 = vpop.permute.xlu0 %888
    %892 = vset.pattern.permute.xlu0 0
    %893 = vperm.xlu0 %892, %v775
    %v894 = vpop.permute.xlu0 %893
    %897 = vset.pattern.permute.xlu0 0
    %898 = vperm.xlu0 %897, %v776
    %v899 = vpop.permute.xlu0 %898
    %902 = vset.pattern.permute.xlu0 0
    %903 = vperm.xlu0 %902, %v777
    %v904 = vpop.permute.xlu0 %903
    %907 = vset.pattern.permute.xlu0 0
    %908 = vperm.xlu0 %907, %v778
    %v909 = vpop.permute.xlu0 %908
    %912 = vset.pattern.permute.xlu0 0
    %913 = vperm.xlu0 %912, %v779
    %v914 = vpop.permute.xlu0 %913
    %917 = vset.pattern.permute.xlu0 0
    %918 = vperm.xlu0 %917, %v780
    %v919 = vpop.permute.xlu0 %918
    %922 = vset.pattern.permute.xlu0 0
    %923 = vperm.xlu0 %922, %v781
    %v924 = vpop.permute.xlu0 %923
    %927 = vset.pattern.permute.xlu0 0
    %928 = vperm.xlu0 %927, %v782
    %v929 = vpop.permute.xlu0 %928
    %932 = vset.pattern.permute.xlu0 0
    %933 = vperm.xlu0 %932, %v783
    %v934 = vpop.permute.xlu0 %933
    %937 = vset.pattern.permute.xlu0 0
    %938 = vperm.xlu0 %937, %v784
    %v939 = vpop.permute.xlu0 %938
    %942 = vset.pattern.permute.xlu0 0
    %943 = vperm.xlu0 %942, %v785
    %v944 = vpop.permute.xlu0 %943
    %v946 = vmul.f32 %v722, %v789
    %v947 = vmul.f32 %v723, %v794
    %v948 = vmul.f32 %v724, %v799
    %v949 = vmul.f32 %v725, %v804
    %v950 = vmul.f32 %v726, %v809
    %v951 = vmul.f32 %v727, %v814
    %v952 = vmul.f32 %v728, %v819
    %v953 = vmul.f32 %v729, %v824
    %v954 = vmul.f32 %v730, %v829
    %v955 = vmul.f32 %v731, %v834
    %v956 = vmul.f32 %v732, %v839
    %v957 = vmul.f32 %v733, %v844
    %v958 = vmul.f32 %v734, %v849
    %v959 = vmul.f32 %v735, %v854
    %v960 = vmul.f32 %v736, %v859
    %v961 = vmul.f32 %v737, %v864
    %v962 = vmul.f32 %v738, %v869
    %v963 = vmul.f32 %v739, %v874
    %v964 = vmul.f32 %v740, %v879
    %v965 = vmul.f32 %v741, %v884
    %v966 = vmul.f32 %v742, %v889
    %v967 = vmul.f32 %v743, %v894
    %v968 = vmul.f32 %v744, %v899
    %v969 = vmul.f32 %v745, %v904
    %v970 = vmul.f32 %v746, %v909
    %v971 = vmul.f32 %v747, %v914
    %v972 = vmul.f32 %v748, %v919
    %v973 = vmul.f32 %v749, %v924
    %v974 = vmul.f32 %v750, %v929
    %v975 = vmul.f32 %v751, %v934
    %v976 = vmul.f32 %v752, %v939
    %v977 = vmul.f32 %v753, %v944
    %v978 = vsel %vm611, %v946, 0.0
    %v979 = vsel %vm611, %v947, 0.0
    %v980 = vadd.f32 %v978, %v979
    %v981 = vsel %vm611, %v948, 0.0
    %v982 = vadd.f32 %v980, %v981
    %v983 = vsel %vm611, %v949, 0.0
    %v984 = vadd.f32 %v982, %v983
    %v985 = vsel %vm611, %v950, 0.0
    %v986 = vadd.f32 %v984, %v985
    %v987 = vsel %vm611, %v951, 0.0
    %v988 = vadd.f32 %v986, %v987
    %v989 = vsel %vm611, %v952, 0.0
    %v990 = vadd.f32 %v988, %v989
    %v991 = vsel %vm611, %v953, 0.0
    %v992 = vadd.f32 %v990, %v991
    %v993 = vsel %vm611, %v954, 0.0
    %v994 = vadd.f32 %v992, %v993
    %v995 = vsel %vm611, %v955, 0.0
    %v996 = vadd.f32 %v994, %v995
    %v997 = vsel %vm611, %v956, 0.0
    %v998 = vadd.f32 %v996, %v997
    %v999 = vsel %vm611, %v957, 0.0
    %v1000 = vadd.f32 %v998, %v999
    %v1001 = vsel %vm611, %v958, 0.0
    %v1002 = vadd.f32 %v1000, %v1001
    %v1003 = vsel %vm611, %v959, 0.0
    %v1004 = vadd.f32 %v1002, %v1003
    %v1005 = vsel %vm611, %v960, 0.0
    %v1006 = vadd.f32 %v1004, %v1005
    %v1007 = vsel %vm611, %v961, 0.0
    %v1008 = vadd.f32 %v1006, %v1007
    %v1009 = vsel %vm611, %v962, 0.0
    %v1010 = vadd.f32 %v1008, %v1009
    %v1011 = vsel %vm611, %v963, 0.0
    %v1012 = vadd.f32 %v1010, %v1011
    %v1013 = vsel %vm611, %v964, 0.0
    %v1014 = vadd.f32 %v1012, %v1013
    %v1015 = vsel %vm611, %v965, 0.0
    %v1016 = vadd.f32 %v1014, %v1015
    %v1017 = vsel %vm611, %v966, 0.0
    %v1018 = vadd.f32 %v1016, %v1017
    %v1019 = vsel %vm611, %v967, 0.0
    %v1020 = vadd.f32 %v1018, %v1019
    %v1021 = vsel %vm611, %v968, 0.0
    %v1022 = vadd.f32 %v1020, %v1021
    %v1023 = vsel %vm611, %v969, 0.0
    %v1024 = vadd.f32 %v1022, %v1023
    %v1025 = vsel %vm611, %v970, 0.0
    %v1026 = vadd.f32 %v1024, %v1025
    %v1027 = vsel %vm611, %v971, 0.0
    %v1028 = vadd.f32 %v1026, %v1027
    %v1029 = vsel %vm611, %v972, 0.0
    %v1030 = vadd.f32 %v1028, %v1029
    %v1031 = vsel %vm611, %v973, 0.0
    %v1032 = vadd.f32 %v1030, %v1031
    %v1033 = vsel %vm611, %v974, 0.0
    %v1034 = vadd.f32 %v1032, %v1033
    %v1035 = vsel %vm611, %v975, 0.0
    %v1036 = vadd.f32 %v1034, %v1035
    %v1037 = vsel %vm611, %v976, 0.0
    %v1038 = vadd.f32 %v1036, %v1037
    %v1039 = vsel %vm611, %v977, 0.0
    %v1040 = vadd.f32 %v1038, %v1039
    %1041 = vadd.xlane.f32.xlu0 %v1040
    %v1042 = vpop.xlane.xlu0 %1041
    %v1043 = vrot.slane %v1042, 4
    %v1044 = vadd.f32 %v1042, %v1043
    %v1045 = vrot.slane %v1044, 2
    %v1046 = vadd.f32 %v1044, %v1045
    %v1047 = vrot.slane %v1046, 1
    %v1048 = vadd.f32 %v1046, %v1047
    %s1049 = vtos %v1048
    %s1050 = sld [smem:[#allocation2]]
    %s1051 = sadd.f32 %s1050, %s683
    %s1052 = scalar_lea.smem [#allocation2], 0
    %1053 = sst [smem:[%s1052]] %s1051
    %s1054 = sld [smem:[#allocation2 + $0x1]]
    %s1055 = sadd.f32 %s1054, %s1049
    %s1056 = scalar_lea.smem [#allocation2], 1
    %1057 = sst [smem:[%s1056]] %s1055
    %s1058 = sld [smem:[#allocation2]]
    %s1059 = smul.f32 %s1058, 0.001953125
    %s1060 = scalar_lea.smem [#allocation3], 0
    %1061 = sst [smem:[%s1060]] %s1059
    %s1062 = sld [smem:[#allocation2 + $0x1]]
    %s1063 = smul.f32 %s1062, 0.0078125
    %s1064 = scalar_lea.smem [#allocation3], 1
    %1065 = sst [smem:[%s1064]] %s1063
    // Predicated region
    $region30: #{tpu_custom_call.1} parent=1 // pred_check
      _
    $region31: #{tpu_custom_call.1} parent=1 // pred_check_branch
      %1067 = sbr.rel (0) target = $region33
    $region32: #{tpu_custom_call.1} parent=1 // pred_region
      %s1069 = ssub.s32 16, 16
      %1070 = vsyncadd [#allocation4], %s1069
      %1073 = dma.smem_to_hbm [#allocation3], 16, %s6, [#allocation4]
    $region33: #{tpu_custom_call.1} parent=1 // pred_fallthru
      _
    // Predicated region
    $region34: #{tpu_custom_call.1} parent=1 // pred_check
      _
    $region35: #{tpu_custom_call.1} parent=1 // pred_check_branch
      %1075 = sbr.rel (0) target = $region37
    $region36: #{tpu_custom_call.1} parent=1 // pred_region
      %1076 = dma.done [#allocation4], 16
    $region37: #{tpu_custom_call.1} parent=1 // pred_fallthru
      _
    %1077 = sfence
    %1078 = vsyncpa [#allocation4], 1

</llo_original>
